<compile_context>
chip_gen: v7x
topology: tpu7x:2x2x1
jax: 0.10.0
libtpu: 0.0.40
codegen_flags: <defaults>
</compile_context>

<pallas_src>
import jax
import jax.numpy as jnp
from jax.experimental import pallas as pl
from jax.experimental.pallas import tpu as pltpu

n_letters = 4            # 'ACGT'
n_hidden = 128
n_output = 8             # number of output classes (synthetic choice)
n_fused = n_hidden + n_output

all_letters = "ACGT"


def letter_to_index(letter):
    return all_letters.find(letter)


def line_to_indices(line):
    # int32 letter indices; replaces the one-hot lineToTensor materialization.
    return jnp.array([letter_to_index(c) for c in line], dtype=jnp.int32)


def rnn_seq_kernel(
    idx_ref,     # (seq_len,) int32  — scalar prefetch, lives in SMEM
    h0_ref,      # (B, n_hidden)     — initial hidden, resident
    w_h_ref,     # (n_hidden, n_fused)  fused [W_i2h.T | W_i2o.T] hidden rows, resident
    w_x_ref,     # (n_letters, n_fused) fused input rows, resident
    b_ref,       # (1, n_fused)      fused [b_i2h | b_i2o], resident
    out_ref,     # (1, B, n_output)  per-step log-softmax output block
    h_ref,       # (B, n_hidden)     resident output; doubles as carried state
):
    t = pl.program_id(0)

    @pl.when(t == 0)
    def _():
        h_ref[...] = h0_ref[...]

    h = h_ref[...]

    # One-hot input contribution == selecting one row of the fused input weight.
    idx = idx_ref[t]
    x_row = w_x_ref[pl.ds(idx, 1), :]                      # (1, n_fused)

    # Single fused MXU push: combined @ [W_i2h.T | W_i2o.T] + [b_i2h | b_i2o]
    pre = (
        jnp.dot(h, w_h_ref[...], preferred_element_type=jnp.float32)
        + x_row
        + b_ref[...]
    )                                                      # (B, n_fused)

    new_h = pre[:, :n_hidden]                              # (B, n_hidden)
    logits = pre[:, n_hidden:]                             # (B, n_output)

    # log_softmax(dim=1), numerically stable
    m = jnp.max(logits, axis=-1, keepdims=True)
    shifted = logits - m
    lse = jnp.log(jnp.sum(jnp.exp(shifted), axis=-1, keepdims=True))

    out_ref[0] = shifted - lse
    h_ref[...] = new_h


def rnn_forward(indices, h0, params):
    """Run the RNN over a whole sequence in one pallas_call.

    indices: (seq_len,) int32 letter indices
    h0:      (B, n_hidden) f32 initial hidden (B == 1 for the module)
    returns: (per-step log-probs (seq_len, B, n_output), final hidden (B, n_hidden))
    """
    w_h, w_x, b = params
    seq_len = int(indices.shape[0])
    B = int(h0.shape[0])

    grid_spec = pltpu.PrefetchScalarGridSpec(
        num_scalar_prefetch=1,
        grid=(seq_len,),
        in_specs=[
            pl.BlockSpec((B, n_hidden), lambda t, idx: (0, 0)),        # h0
            pl.BlockSpec((n_hidden, n_fused), lambda t, idx: (0, 0)),  # w_h (resident)
            pl.BlockSpec((n_letters, n_fused), lambda t, idx: (0, 0)), # w_x (resident)
            pl.BlockSpec((1, n_fused), lambda t, idx: (0, 0)),         # bias (resident)
        ],
        out_specs=(
            pl.BlockSpec((1, B, n_output), lambda t, idx: (t, 0, 0)),  # per-step out
            pl.BlockSpec((B, n_hidden), lambda t, idx: (0, 0)),        # carried hidden
        ),
    )

    out, h_final = pl.pallas_call(
        rnn_seq_kernel,
        out_shape=(
            jax.ShapeDtypeStruct((seq_len, B, n_output), jnp.float32),
            jax.ShapeDtypeStruct((B, n_hidden), jnp.float32),
        ),
        grid_spec=grid_spec,
        compiler_params=pltpu.CompilerParams(
            dimension_semantics=("arbitrary",),   # time axis carries state
        ),
    )(indices, h0, w_h, w_x, b)
    return out, h_final


def init_params(key):
    """nn.Linear-style init (uniform +-1/sqrt(fan_in)), pre-fused for the kernel."""
    fan_in = n_letters + n_hidden
    bound = 1.0 / jnp.sqrt(jnp.float32(fan_in))
    k1, k2, k3, k4 = jax.random.split(key, 4)

    # PyTorch layout: (out_features, in_features)
    w_i2h = jax.random.uniform(k1, (n_hidden, fan_in), jnp.float32, -bound, bound)
    b_i2h = jax.random.uniform(k2, (n_hidden,), jnp.float32, -bound, bound)
    w_i2o = jax.random.uniform(k3, (n_output, fan_in), jnp.float32, -bound, bound)
    b_i2o = jax.random.uniform(k4, (n_output,), jnp.float32, -bound, bound)

    # Fuse: combined @ [W_i2h.T | W_i2o.T] -> [new_hidden | logits]
    w_full = jnp.concatenate([w_i2h.T, w_i2o.T], axis=1)   # (fan_in, n_fused)
    w_x = w_full[:n_letters, :]                            # (n_letters, n_fused)
    w_h = w_full[n_letters:, :]                            # (n_hidden,  n_fused)
    b = jnp.concatenate([b_i2h, b_i2o]).reshape(1, n_fused)
    return w_h, w_x, b


def reference_forward(indices, h0, params):
    """Pure-JAX reference identical to the PyTorch forward unrolled over time."""
    w_h, w_x, b = params
    h = h0
    outs = []
    for t in range(int(indices.shape[0])):
        x = jax.nn.one_hot(indices[t], n_letters, dtype=jnp.float32)[None, :]
        pre = x @ w_x + h @ w_h + b            # == cat([x, h], 1) @ W_fused + b
        h = pre[:, :n_hidden]
        outs.append(jax.nn.log_softmax(pre[:, n_hidden:], axis=1))
    return jnp.stack(outs, axis=0), h


if __name__ == "__main__":
    key = jax.random.PRNGKey(0)
    params = init_params(key)

    line = "TGCATTTTTTTCACATCGAGTGCAACTT"          # small sequence (28 steps)
    indices = line_to_indices(line)                # (seq_len,) int32
    h0 = jnp.zeros((1, n_hidden), dtype=jnp.float32)   # initHidden()

    out, h_final = rnn_forward(indices, h0, params)
    jax.block_until_ready((out, h_final))

    ref_out, ref_h = reference_forward(indices, h0, params)
    assert out.shape == (len(line), 1, n_output)
    assert h_final.shape == (1, n_hidden)
    assert jnp.allclose(out, ref_out, atol=1e-4), "output mismatch"
    assert jnp.allclose(h_final, ref_h, atol=1e-4), "hidden mismatch"

    print("KERNEL_OK")
</pallas_src>

<mosaic_0001>
module attributes {stable_mosaic.version = 11 : i64} {
  func.func @rnn_seq_kernel(%arg0: i32, %arg1: memref<28xi32, #tpu.memory_space<smem>>, %arg2: memref<1x128xf32, #tpu.memory_space<vmem>>, %arg3: memref<128x136xf32, #tpu.memory_space<vmem>>, %arg4: memref<4x136xf32, #tpu.memory_space<vmem>>, %arg5: memref<1x136xf32, #tpu.memory_space<vmem>>, %arg6: memref<1x1x8xf32, #tpu.memory_space<vmem>>, %arg7: memref<1x128xf32, #tpu.memory_space<vmem>>) attributes {dimension_semantics = [#tpu.dimension_semantics<arbitrary>], iteration_bounds = array<i64: 28>, scalar_prefetch = 1 : i64, scratch_operands = 0 : i64, tpu.core_type = #tpu.core_type<tc>, window_params = [{pipeline_mode = #tpu.pipeline_mode<synchronous>, transform_indices = @transform_0, window_bounds = array<i64: 1, 128>}, {pipeline_mode = #tpu.pipeline_mode<synchronous>, transform_indices = @transform_1, window_bounds = array<i64: 128, 136>}, {pipeline_mode = #tpu.pipeline_mode<synchronous>, transform_indices = @transform_2, window_bounds = array<i64: 4, 136>}, {pipeline_mode = #tpu.pipeline_mode<synchronous>, transform_indices = @transform_3, window_bounds = array<i64: 1, 136>}, {transform_indices = @transform_4, window_bounds = array<i64: 1, 1, 8>}, {pipeline_mode = #tpu.pipeline_mode<synchronous>, transform_indices = @transform_5, window_bounds = array<i64: 1, 128>}]} {
    %c0_i32 = arith.constant 0 : i32
    %0 = arith.cmpi eq, %arg0, %c0_i32 : i32
    %1 = arith.extui %0 : i1 to i32
    %c0_i32_0 = arith.constant 0 : i32
    %2 = arith.cmpi ne, %1, %c0_i32_0 : i32
    scf.if %2 {
      %c0_14 = arith.constant 0 : index
      %c0_15 = arith.constant 0 : index
      %29 = vector.load %arg2[%c0_14, %c0_15] : memref<1x128xf32, #tpu.memory_space<vmem>>, vector<1x128xf32>
      %c0_16 = arith.constant 0 : index
      %c0_17 = arith.constant 0 : index
      %30 = vector.load %arg7[%c0_16, %c0_17] : memref<1x128xf32, #tpu.memory_space<vmem>>, vector<1x128xf32>
      tpu.vector_store %arg7[%c0_16, %c0_17], %29 {strides = array<i32>} : memref<1x128xf32, #tpu.memory_space<vmem>>, vector<1x128xf32>,
    } else {
    }
    %c0 = arith.constant 0 : index
    %c0_1 = arith.constant 0 : index
    %3 = vector.load %arg7[%c0, %c0_1] : memref<1x128xf32, #tpu.memory_space<vmem>>, vector<1x128xf32>
    %4 = arith.index_cast %arg0 : i32 to index
    %5 = memref.load %arg1[%4] : memref<28xi32, #tpu.memory_space<smem>>
    %6 = arith.index_cast %5 : i32 to index
    %c0_2 = arith.constant 0 : index
    %7 = vector.load %arg4[%6, %c0_2] : memref<4x136xf32, #tpu.memory_space<vmem>>, vector<1x136xf32>
    %c0_3 = arith.constant 0 : index
    %c0_4 = arith.constant 0 : index
    %8 = vector.load %arg3[%c0_3, %c0_4] : memref<128x136xf32, #tpu.memory_space<vmem>>, vector<128x136xf32>
    %cst = arith.constant dense<0.000000e+00> : vector<1x136xf32>
    %9 = tpu.matmul %3, %8, %cst {dimension_numbers = #tpu.dot_dimension_numbers<[1], [0], [0], [1], [0, 0, 1, 1], [], []>} : vector<1x128xf32>, vector<128x136xf32>, vector<1x136xf32> -> vector<1x136xf32>
    %10 = arith.addf %9, %7 : vector<1x136xf32>
    %c0_5 = arith.constant 0 : index
    %c0_6 = arith.constant 0 : index
    %11 = vector.load %arg5[%c0_5, %c0_6] : memref<1x136xf32, #tpu.memory_space<vmem>>, vector<1x136xf32>
    %12 = arith.addf %10, %11 : vector<1x136xf32>
    %13 = vector.extract_strided_slice %12 {offsets = [0, 0], sizes = [1, 128], strides = [1, 1]} : vector<1x136xf32> to vector<1x128xf32>
    %14 = vector.extract_strided_slice %12 {offsets = [0, 128], sizes = [1, 8], strides = [1, 1]} : vector<1x136xf32> to vector<1x8xf32>
    %cst_7 = arith.constant dense<0xFF800000> : vector<1xf32>
    %15 = vector.multi_reduction <maximumf>, %14, %cst_7 [1] : vector<1x8xf32> to vector<1xf32>
    %16 = vector.shape_cast %15 : vector<1xf32> to vector<1x1xf32>
    %17 = vector.broadcast %16 : vector<1x1xf32> to vector<1x8xf32>
    %18 = arith.subf %14, %17 : vector<1x8xf32>
    %19 = math.exp %18 : vector<1x8xf32>
    %cst_8 = arith.constant dense<0.000000e+00> : vector<1xf32>
    %20 = vector.multi_reduction <add>, %19, %cst_8 [1] : vector<1x8xf32> to vector<1xf32>
    %21 = vector.shape_cast %20 : vector<1xf32> to vector<1x1xf32>
    %22 = math.log %21 : vector<1x1xf32>
    %23 = vector.broadcast %22 : vector<1x1xf32> to vector<1x8xf32>
    %24 = arith.subf %18, %23 : vector<1x8xf32>
    %c0_9 = arith.constant 0 : index
    %c0_10 = arith.constant 0 : index
    %c0_11 = arith.constant 0 : index
    %25 = vector.load %arg6[%c0_9, %c0_10, %c0_11] : memref<1x1x8xf32, #tpu.memory_space<vmem>>, vector<1x1x8xf32>
    %26 = vector.shape_cast %25 : vector<1x1x8xf32> to vector<1x8xf32>
    %27 = vector.shape_cast %24 : vector<1x8xf32> to vector<1x1x8xf32>
    tpu.vector_store %arg6[%c0_9, %c0_10, %c0_11], %27 {strides = array<i32>} : memref<1x1x8xf32, #tpu.memory_space<vmem>>, vector<1x1x8xf32>,
    %c0_12 = arith.constant 0 : index
    %c0_13 = arith.constant 0 : index
    %28 = vector.load %arg7[%c0_12, %c0_13] : memref<1x128xf32, #tpu.memory_space<vmem>>, vector<1x128xf32>
    tpu.vector_store %arg7[%c0_12, %c0_13], %13 {strides = array<i32>} : memref<1x128xf32, #tpu.memory_space<vmem>>, vector<1x128xf32>,
    return
  }
  func.func @transform_0(%arg0: i32, %arg1: memref<28xi32, #tpu.memory_space<smem>>) -> (i32, i32) {
    %c0_i32 = arith.constant 0 : i32
    %c0_i32_0 = arith.constant 0 : i32
    %c0_i32_1 = arith.constant 0 : i32
    return %c0_i32, %c0_i32_0 : i32, i32
  }
  func.func @transform_1(%arg0: i32, %arg1: memref<28xi32, #tpu.memory_space<smem>>) -> (i32, i32) {
    %c0_i32 = arith.constant 0 : i32
    %c0_i32_0 = arith.constant 0 : i32
    %c0_i32_1 = arith.constant 0 : i32
    return %c0_i32, %c0_i32_0 : i32, i32
  }
  func.func @transform_2(%arg0: i32, %arg1: memref<28xi32, #tpu.memory_space<smem>>) -> (i32, i32) {
    %c0_i32 = arith.constant 0 : i32
    %c0_i32_0 = arith.constant 0 : i32
    %c0_i32_1 = arith.constant 0 : i32
    return %c0_i32, %c0_i32_0 : i32, i32
  }
  func.func @transform_3(%arg0: i32, %arg1: memref<28xi32, #tpu.memory_space<smem>>) -> (i32, i32) {
    %c0_i32 = arith.constant 0 : i32
    %c0_i32_0 = arith.constant 0 : i32
    %c0_i32_1 = arith.constant 0 : i32
    return %c0_i32, %c0_i32_0 : i32, i32
  }
  func.func @transform_4(%arg0: i32, %arg1: memref<28xi32, #tpu.memory_space<smem>>) -> (i32, i32, i32) {
    %c0_i32 = arith.constant 0 : i32
    %c0_i32_0 = arith.constant 0 : i32
    %c0_i32_1 = arith.constant 0 : i32
    return %arg0, %c0_i32, %c0_i32_0 : i32, i32, i32
  }
  func.func @transform_5(%arg0: i32, %arg1: memref<28xi32, #tpu.memory_space<smem>>) -> (i32, i32) {
    %c0_i32 = arith.constant 0 : i32
    %c0_i32_0 = arith.constant 0 : i32
    %c0_i32_1 = arith.constant 0 : i32
    return %c0_i32, %c0_i32_0 : i32, i32
  }
}

</mosaic_0001>

<llo_original>
// kernel: tpu_custom_call.1
$region0: #{tpu_custom_call.1}
  #allocation0 [shape = 'u32[]', space=smem, size = 0x4, offset = 0x4, fixed_abs, tag = 'smem constant byte address 0x4 - core index']
  #allocation1 [shape = 'u32[144,128]{1,0:T(1,128)}', space=vmem, size = 0x12000, scoped, tag = 'internal scratch']
  #allocation2 [shape = 's32[1]{0}', space=sflag, size = 0x4, scoped, tag = 'scoped memory for tpu_custom_call.1']
  #allocation3 [shape = 'u8[512]{0}', space=smem, size = 0x200, scoped, tag = 'prefetched SMEM operand 0']
  %s0 = inlined_call_operand.vmem [shape: s32[28], index: 0, kind: input, shape index: {}]
  %s1 = inlined_call_operand.vmem [shape: f32[1,128], index: 1, kind: input, shape index: {}]
  %s2 = inlined_call_operand.vmem [shape: f32[128,136], index: 2, kind: input, shape index: {}]
  %s3 = inlined_call_operand.vmem [shape: f32[4,136], index: 3, kind: input, shape index: {}]
  %s4 = inlined_call_operand.vmem [shape: f32[1,136], index: 4, kind: input, shape index: {}]
  %s5 = inlined_call_operand.vmem [shape: f32[28,1,8], index: 5, kind: output, shape index: {0}]
  %s6 = inlined_call_operand.hbm [shape: f32[1,128], index: 6, kind: output, shape index: {1}]
  %7 = xla_tuple %s5, %s6
  %s8 = sld [smem:[#allocation0]]
  $region61: #{tpu_custom_call.1} parent=0
    _
  %s10 = ssub.s32 1, %s8
  %s11 = scalar_select 0, %s10, %s8
  %s12 = sshll.u32 %s0, 4
  %s13 = int_to_ptr.vmem [resolvable:$true] %s12
  %15 = dma.vmem_to_smem %s13, 16, [#allocation3], [#allocation2]
  %16 = dma.done [#allocation2], 16
  %17 = sfence
  $region1: #{tpu_custom_call.1} parent=0
    #allocation4 [shape = 'u8[512]{0}', space=vmem, size = 0x400, scoped, tag = 'output window, operand 1, single buffered']
    #allocation5 [shape = 's32[2]{0}', space=sflag, size = 0x8, scoped, tag = 'scoped memory for tpu_custom_call.1']
    %18 = vsyncpa [#allocation5], 0
    loop: start=0, step=1, limit=30
    $region2: #{tpu_custom_call.1} parent=1 // loop_pre_header
      _
    $region3: #{tpu_custom_call.1} parent=1 // loop_header
      %s20 = sphi 0, %s24
      %p21 = scmp.ge.s32.totalorder %s20, 30
      %s28 = sphi 0, %s28
      %s30 = sphi 0, %s28
      %s31 = sphi 0, %s30
      %s45 = sphi 0, %s31
      %s49 = sphi 0, %s49
      %s51 = sphi 0, %s49
      %s52 = sphi 0, %s51
      %s66 = sphi 0, %s52
      %s70 = sphi 0, %s70
      %s72 = sphi 0, %s70
      %s73 = sphi 0, %s72
      %s87 = sphi 0, %s73
      %s91 = sphi 0, %s91
      %s93 = sphi 0, %s91
      %s94 = sphi 0, %s93
      %s108 = sphi 0, %s94
      %s114 = sphi 0, %s116
      %s117 = sphi 0, %s114
      %s118 = sphi 0, %s117
      %s134 = sphi 0, %s118
      %s138 = sphi 0, %s138
      %s140 = sphi 0, %s138
      %s141 = sphi 0, %s140
      %s155 = sphi 0, %s141
    $region4: #{tpu_custom_call.1} parent=1 // loop_header_branch
      %23 = sbr.rel (%p21) target = $region8
    $region5: #{tpu_custom_call.1} parent=1 // loop_body
      %s25 = ssub.s32 %s20, 1
      %s26 = ssub.s32 %s20, 2
      %s27 = sadd.s32 %s20, 1
      %s29 = sadd.s32 %s28, 1
      %p32 = scmp.eq.s32.totalorder %s20, 27
      %p33 = scmp.ne.s32.totalorder %s28, %s30
      %p34 = scmp.eq.s32.totalorder %s20, 0
      %p35 = por %p33, %p34
      %p36 = scmp.ne.s32.totalorder %s28, %s30
      %p37 = scmp.eq.s32.totalorder %s25, 27
      %p38 = por %p36, %p37
      %p39 = scmp.ne.s32.totalorder %s30, %s31
      %p40 = scmp.eq.s32.totalorder %s25, 0
      %p41 = por %p39, %p40
      %p42 = scmp.ne.s32.totalorder %s30, %s31
      %p43 = scmp.eq.s32.totalorder %s26, 27
      %p44 = por %p42, %p43
      %p46 = scmp.ne.s32.totalorder %s31, %s45
      %p47 = scmp.eq.s32.totalorder %s26, 0
      %p48 = por %p46, %p47
      %s50 = sadd.s32 %s49, 1
      %p53 = scmp.eq.s32.totalorder %s20, 27
      %p54 = scmp.ne.s32.totalorder %s49, %s51
      %p55 = scmp.eq.s32.totalorder %s20, 0
      %p56 = por %p54, %p55
      %p57 = scmp.ne.s32.totalorder %s49, %s51
      %p58 = scmp.eq.s32.totalorder %s25, 27
      %p59 = por %p57, %p58
      %p60 = scmp.ne.s32.totalorder %s51, %s52
      %p61 = scmp.eq.s32.totalorder %s25, 0
      %p62 = por %p60, %p61
      %p63 = scmp.ne.s32.totalorder %s51, %s52
      %p64 = scmp.eq.s32.totalorder %s26, 27
      %p65 = por %p63, %p64
      %p67 = scmp.ne.s32.totalorder %s52, %s66
      %p68 = scmp.eq.s32.totalorder %s26, 0
      %p69 = por %p67, %p68
      %s71 = sadd.s32 %s70, 1
      %p74 = scmp.eq.s32.totalorder %s20, 27
      %p75 = scmp.ne.s32.totalorder %s70, %s72
      %p76 = scmp.eq.s32.totalorder %s20, 0
      %p77 = por %p75, %p76
      %p78 = scmp.ne.s32.totalorder %s70, %s72
      %p79 = scmp.eq.s32.totalorder %s25, 27
      %p80 = por %p78, %p79
      %p81 = scmp.ne.s32.totalorder %s72, %s73
      %p82 = scmp.eq.s32.totalorder %s25, 0
      %p83 = por %p81, %p82
      %p84 = scmp.ne.s32.totalorder %s72, %s73
      %p85 = scmp.eq.s32.totalorder %s26, 27
      %p86 = por %p84, %p85
      %p88 = scmp.ne.s32.totalorder %s73, %s87
      %p89 = scmp.eq.s32.totalorder %s26, 0
      %p90 = por %p88, %p89
      %s92 = sadd.s32 %s91, 1
      %p95 = scmp.eq.s32.totalorder %s20, 27
      %p96 = scmp.ne.s32.totalorder %s91, %s93
      %p97 = scmp.eq.s32.totalorder %s20, 0
      %p98 = por %p96, %p97
      %p99 = scmp.ne.s32.totalorder %s91, %s93
      %p100 = scmp.eq.s32.totalorder %s25, 27
      %p101 = por %p99, %p100
      %p102 = scmp.ne.s32.totalorder %s93, %s94
      %p103 = scmp.eq.s32.totalorder %s25, 0
      %p104 = por %p102, %p103
      %p105 = scmp.ne.s32.totalorder %s93, %s94
      %p106 = scmp.eq.s32.totalorder %s26, 27
      %p107 = por %p105, %p106
      %p109 = scmp.ne.s32.totalorder %s94, %s108
      %p110 = scmp.eq.s32.totalorder %s26, 0
      %p111 = por %p109, %p110
      %s112 = ssub.s32 %s20, %s27
      %p113 = scmp.eq.s32.totalorder %s112, 0
      %s115 = sadd.s32 %s114, 1
      %s116 = scalar_select %p113, %s114, %s115
      %p119 = pneg %p113
      %p120 = scmp.eq.s32.totalorder %s20, 27
      %p121 = por %p119, %p120
      %p122 = scmp.ne.s32.totalorder %s114, %s117
      %p123 = scmp.eq.s32.totalorder %s20, 0
      %p124 = por %p122, %p123
      %p125 = scmp.ne.s32.totalorder %s114, %s117
      %p126 = scmp.eq.s32.totalorder %s25, 27
      %p127 = por %p125, %p126
      %p128 = scmp.ne.s32.totalorder %s117, %s118
      %p129 = scmp.eq.s32.totalorder %s25, 0
      %p130 = por %p128, %p129
      %p131 = scmp.ne.s32.totalorder %s117, %s118
      %p132 = scmp.eq.s32.totalorder %s26, 27
      %p133 = por %p131, %p132
      %p135 = scmp.ne.s32.totalorder %s118, %s134
      %p136 = scmp.eq.s32.totalorder %s26, 0
      %p137 = por %p135, %p136
      %s139 = sadd.s32 %s138, 1
      %p142 = scmp.eq.s32.totalorder %s20, 27
      %p143 = scmp.ne.s32.totalorder %s138, %s140
      %p144 = scmp.eq.s32.totalorder %s20, 0
      %p145 = por %p143, %p144
      %p146 = scmp.ne.s32.totalorder %s138, %s140
      %p147 = scmp.eq.s32.totalorder %s25, 27
      %p148 = por %p146, %p147
      %p149 = scmp.ne.s32.totalorder %s140, %s141
      %p150 = scmp.eq.s32.totalorder %s25, 0
      %p151 = por %p149, %p150
      %p152 = scmp.ne.s32.totalorder %s140, %s141
      %p153 = scmp.eq.s32.totalorder %s26, 27
      %p154 = por %p152, %p153
      %p156 = scmp.ne.s32.totalorder %s141, %s155
      %p157 = scmp.eq.s32.totalorder %s26, 0
      %p158 = por %p156, %p157
      %p159 = scmp.le.s32.totalorder 1, %s20
      %p160 = scmp.lt.s32.totalorder %s20, 29
      %p161 = pnand %p159, %p160
      %p162 = pneg %p161
      // Predicated region
      $region9: #{tpu_custom_call.1} parent=5 // pred_check
        _
      $region10: #{tpu_custom_call.1} parent=5 // pred_check_branch
        %164 = sbr.rel (%p161) target = $region12
      $region11: #{tpu_custom_call.1} parent=5 // pred_region
        %s165 = ssub.s32 %s20, 1
        // Predicated region
        $region13: #{tpu_custom_call.1} parent=11 // pred_check
          %p166 = pneg %p41
        $region14: #{tpu_custom_call.1} parent=11 // pred_check_branch
          %168 = sbr.rel (%p166) target = $region16
        $region15: #{tpu_custom_call.1} parent=11 // pred_region
          _
        $region16: #{tpu_custom_call.1} parent=11 // pred_fallthru
          _
        // Predicated region
        $region17: #{tpu_custom_call.1} parent=11 // pred_check
          %p169 = pneg %p62
        $region18: #{tpu_custom_call.1} parent=11 // pred_check_branch
          %171 = sbr.rel (%p169) target = $region20
        $region19: #{tpu_custom_call.1} parent=11 // pred_region
          _
        $region20: #{tpu_custom_call.1} parent=11 // pred_fallthru
          _
        // Predicated region
        $region21: #{tpu_custom_call.1} parent=11 // pred_check
          %p172 = pneg %p83
        $region22: #{tpu_custom_call.1} parent=11 // pred_check_branch
          %174 = sbr.rel (%p172) target = $region24
        $region23: #{tpu_custom_call.1} parent=11 // pred_region
          _
        $region24: #{tpu_custom_call.1} parent=11 // pred_fallthru
          _
        // Predicated region
        $region25: #{tpu_custom_call.1} parent=11 // pred_check
          %p175 = pneg %p104
        $region26: #{tpu_custom_call.1} parent=11 // pred_check_branch
          %177 = sbr.rel (%p175) target = $region28
        $region27: #{tpu_custom_call.1} parent=11 // pred_region
          _
        $region28: #{tpu_custom_call.1} parent=11 // pred_fallthru
          _
      $region12: #{tpu_custom_call.1} parent=5 // pred_fallthru
        _
      %p178 = scmp.lt.s32.totalorder %s20, 28
      // Predicated region
      $region29: #{tpu_custom_call.1} parent=5 // pred_check
        %p179 = pneg %p178
      $region30: #{tpu_custom_call.1} parent=5 // pred_check_branch
        %181 = sbr.rel (%p179) target = $region32
      $region31: #{tpu_custom_call.1} parent=5 // pred_region
        _
      $region32: #{tpu_custom_call.1} parent=5 // pred_fallthru
        _
      %p182 = scmp.le.s32.totalorder 1, %s20
      %p183 = scmp.lt.s32.totalorder %s20, 29
      %p184 = pnand %p182, %p183
      %p185 = pneg %p184
      // Predicated region
      $region33: #{tpu_custom_call.1} parent=5 // pred_check
        _
      $region34: #{tpu_custom_call.1} parent=5 // pred_check_branch
        %187 = sbr.rel (%p184) target = $region36
      $region35: #{tpu_custom_call.1} parent=5 // pred_region
        %s188 = ssub.s32 %s20, 1
        %p189 = pneg %p41
        %p190 = pneg %p38
        %p191 = pneg %p62
        %p192 = pneg %p59
        %p193 = pneg %p83
        %p194 = pneg %p80
        %p195 = pneg %p104
        %p196 = pneg %p101
        %p197 = pneg %p130
        %p198 = pneg %p127
        %p199 = scmp.lt.s32.totalorder %s25, 27
        %s200 = scalar_select %p199, %s25, 27
        %s201 = scalar_lea.vmem %s5, %s200
        %p202 = pneg %p151
        %p203 = pneg %p148
        %p204 = scmp.lt.s32.totalorder %s25, 27
        %s205 = scalar_select %p204, %s25, 27
        %s206 = scalar_lea.vmem %s5, %s205
        %p207 = scmp.eq.s32.totalorder %s25, 0
        // Predicated region
        $region37: #{tpu_custom_call.1} parent=35 // pred_check
          %p208 = pneg %p207
        $region38: #{tpu_custom_call.1} parent=35 // pred_check_branch
          %210 = sbr.rel (%p208) target = $region40
        $region39: #{tpu_custom_call.1} parent=35 // pred_region
          %v211 = vld [vmem:[%s1] sm:$0x1]
          %212 = vst [vmem:[#allocation4] sm:$0x1] %v211
        $region40: #{tpu_custom_call.1} parent=35 // pred_fallthru
          _
        %v213 = vld [vmem:[#allocation4] sm:$0x1]
        %s214 = sld [smem:[#allocation3 + %s25]]
        %s215 = sshra.s32 %s214, 2
        %s216 = sand.u32 %s214, 3
        %s217 = sshra.s32 %s214, 2
        %s218 = sand.u32 %s214, 3
        %s219 = smul.u32 %s215, 2
        %s220 = smul.u32 %s219, 4
        %s221 = sadd.s32 %s220, %s218
        %s222 = scalar_lea.vmem %s3, %s221
        %v223 = vld [vmem:[%s222] ss:$4 sm:$0x3]
        %v224 = vld [vmem:[%s2] sm:$0xff]
        %v225 = vld [vmem:[%s2 + $0x8] sm:$0xff]
        %v226 = vld [vmem:[%s2 + $0x10] sm:$0xff]
        %v227 = vld [vmem:[%s2 + $0x18] sm:$0xff]
        %v228 = vld [vmem:[%s2 + $0x20] sm:$0xff]
        %v229 = vld [vmem:[%s2 + $0x28] sm:$0xff]
        %v230 = vld [vmem:[%s2 + $0x30] sm:$0xff]
        %v231 = vld [vmem:[%s2 + $0x38] sm:$0xff]
        %v232 = vld [vmem:[%s2 + $0x40] sm:$0xff]
        %v233 = vld [vmem:[%s2 + $0x48] sm:$0xff]
        %v234 = vld [vmem:[%s2 + $0x50] sm:$0xff]
        %v235 = vld [vmem:[%s2 + $0x58] sm:$0xff]
        %v236 = vld [vmem:[%s2 + $0x60] sm:$0xff]
        %v237 = vld [vmem:[%s2 + $0x68] sm:$0xff]
        %v238 = vld [vmem:[%s2 + $0x70] sm:$0xff]
        %v239 = vld [vmem:[%s2 + $0x78] sm:$0xff]
        %v240 = vld [vmem:[%s2 + $0x80] sm:$0xff]
        %v241 = vld [vmem:[%s2 + $0x88] sm:$0xff]
        %v242 = vld [vmem:[%s2 + $0x90] sm:$0xff]
        %v243 = vld [vmem:[%s2 + $0x98] sm:$0xff]
        %v244 = vld [vmem:[%s2 + $0xa0] sm:$0xff]
        %v245 = vld [vmem:[%s2 + $0xa8] sm:$0xff]
        %v246 = vld [vmem:[%s2 + $0xb0] sm:$0xff]
        %v247 = vld [vmem:[%s2 + $0xb8] sm:$0xff]
        %v248 = vld [vmem:[%s2 + $0xc0] sm:$0xff]
        %v249 = vld [vmem:[%s2 + $0xc8] sm:$0xff]
        %v250 = vld [vmem:[%s2 + $0xd0] sm:$0xff]
        %v251 = vld [vmem:[%s2 + $0xd8] sm:$0xff]
        %v252 = vld [vmem:[%s2 + $0xe0] sm:$0xff]
        %v253 = vld [vmem:[%s2 + $0xe8] sm:$0xff]
        %v254 = vld [vmem:[%s2 + $0xf0] sm:$0xff]
        %v255 = vld [vmem:[%s2 + $0xf8] sm:$0xff]
        %v257 = vlaneseq
        %v258 = vshrl.u32 %v257, 7
        %v259 = vsub.s32 0, %v258
        %v260 = vrot.slane %v223, %v259
        %v261 = vlaneseq
        %v262 = vshrl.u32 %v261, 7
        %v263 = vsub.s32 1, %v262
        %v264 = vrot.slane %v223, %v263
        %267 = vmatprep.subr.mxu0 %v225
        %268 = vmatpush1.msra.mxu0 %v224
        %269 = vmatprep.subr.mxu0 %v227
        %270 = vmatpush1.msra.mxu0 %v226
        %271 = vmatprep.subr.mxu0 %v229
        %272 = vmatpush1.msra.mxu0 %v228
        %273 = vmatprep.subr.mxu0 %v231
        %274 = vmatpush1.msra.mxu0 %v230
        %275 = vmatprep.subr.mxu0 %v233
        %276 = vmatpush1.msra.mxu0 %v232
        %277 = vmatprep.subr.mxu0 %v235
        %278 = vmatpush1.msra.mxu0 %v234
        %279 = vmatprep.subr.mxu0 %v237
        %280 = vmatpush1.msra.mxu0 %v236
        %281 = vmatprep.subr.mxu0 %v239
        %282 = vmatpush1.msra.mxu0 %v238
        %283 = vmatprep.subr.mxu0 %v241
        %284 = vmatpush1.msra.mxu0 %v240
        %285 = vmatprep.subr.mxu0 %v243
        %286 = vmatpush1.msra.mxu0 %v242
        %287 = vmatprep.subr.mxu0 %v245
        %288 = vmatpush1.msra.mxu0 %v244
        %289 = vmatprep.subr.mxu0 %v247
        %290 = vmatpush1.msra.mxu0 %v246
        %291 = vmatprep.subr.mxu0 %v249
        %292 = vmatpush1.msra.mxu0 %v248
        %293 = vmatprep.subr.mxu0 %v251
        %294 = vmatpush1.msra.mxu0 %v250
        %295 = vmatprep.subr.mxu0 %v253
        %296 = vmatpush1.msra.mxu0 %v252
        %297 = vmatprep.subr.mxu0 %v255
        %298 = vmatpush1.msra.mxu0 %v254
        %299 = vmatprep.subr.mxu0 0.0
        %300 = vmatpush1.msra.mxu0 0.0
        %301 = vmatprep.subr.mxu0 0.0
        %302 = vmatpush1.msra.mxu0 0.0
        %303 = vmatprep.subr.mxu0 0.0
        %304 = vmatpush1.msra.mxu0 0.0
        %305 = vmatprep.subr.mxu0 0.0
        %306 = vmatpush1.msra.mxu0 0.0
        %307 = vmatprep.subr.mxu0 0.0
        %308 = vmatpush1.msra.mxu0 0.0
        %309 = vmatprep.subr.mxu0 0.0
        %310 = vmatpush1.msra.mxu0 0.0
        %311 = vmatprep.subr.mxu0 0.0
        %312 = vmatpush1.msra.mxu0 0.0
        %313 = vmatprep.subr.mxu0 0.0
        %314 = vmatpush1.msra.mxu0 0.0
        %315 = vmatprep.subr.mxu0 0.0
        %316 = vmatpush1.msra.mxu0 0.0
        %317 = vmatprep.subr.mxu0 0.0
        %318 = vmatpush1.msra.mxu0 0.0
        %319 = vmatprep.subr.mxu0 0.0
        %320 = vmatpush1.msra.mxu0 0.0
        %321 = vmatprep.subr.mxu0 0.0
        %322 = vmatpush1.msra.mxu0 0.0
        %323 = vmatprep.subr.mxu0 0.0
        %324 = vmatpush1.msra.mxu0 0.0
        %325 = vmatprep.subr.mxu0 0.0
        %326 = vmatpush1.msra.mxu0 0.0
        %327 = vmatprep.subr.mxu0 0.0
        %328 = vmatpush1.msra.mxu0 0.0
        %329 = vmatprep.subr.mxu0 0.0
        %330 = vmatpush1.msra.mxu0 0.0
        %331 = vmatprep.mubr.f32.mxu0 0.0
        %332 = vmatmul.mubr.f32.gmra.mrb[0].mxu0 %v213
        %v333 = vpop.f32.mrb[0].mxu0
        %v334 = vadd.f32 %v260, %v333
        %v335 = vpop.f32.mrb[0].mxu0
        %v336 = vadd.f32 %v264, %v335
        %337 = vdwg.mxu0
        %v338 = vld [vmem:[%s4] sm:$0x3]
        %v340 = vlaneseq
        %v341 = vshrl.u32 %v340, 7
        %v342 = vsub.s32 0, %v341
        %v343 = vrot.slane %v338, %v342
        %v344 = vlaneseq
        %v345 = vshrl.u32 %v344, 7
        %v346 = vsub.s32 1, %v345
        %v347 = vrot.slane %v338, %v346
        %v350 = vadd.f32 %v334, %v343
        %v351 = vadd.f32 %v336, %v347
        %vm352 = vcmask 57344
        %v353 = vsel %vm352, %v351, -inf
        %354 = vmax.xlane.f32.xlu0 %v353
        %v355 = vpop.xlane.xlu0 %354
        %v356 = vsub.f32 %v351, %v355
        %v357 = vmul.f32 %v356, 1.442695
        %v358 = vpow.pop %v357
        %v359 = vsel %vm352, %v358, 0.0
        %360 = vadd.xlane.f32.xlu0 %v359
        %v361 = vpop.xlane.xlu0 %360
        %v362 = vlog2.pop %v361
        %v363 = vmul.f32 %v362, 0.6931472
        %v364 = vsub.f32 %v356, %v363
        %365 = vst.msk [vmem:[%s206] sm:$0x1] %vm352, %v364
        %366 = vst [vmem:[#allocation4] sm:$0x1] %v350
        %p367 = scmp.lt.s32.totalorder %s25, 27
        %s368 = scalar_select %p367, %s25, 27
        %s369 = scalar_lea.vmem %s5, %s368
        // Predicated region
        $region41: #{tpu_custom_call.1} parent=35 // pred_check
          %p370 = pneg %p127
        $region42: #{tpu_custom_call.1} parent=35 // pred_check_branch
          %372 = sbr.rel (%p370) target = $region44
        $region43: #{tpu_custom_call.1} parent=35 // pred_region
          _
        $region44: #{tpu_custom_call.1} parent=35 // pred_fallthru
          _
        // Predicated region
        $region45: #{tpu_custom_call.1} parent=35 // pred_check
          %p373 = pneg %p148
        $region46: #{tpu_custom_call.1} parent=35 // pred_check_branch
          %375 = sbr.rel (%p373) target = $region48
        $region47: #{tpu_custom_call.1} parent=35 // pred_region
          %s377 = ssub.s32 16, 16
          %378 = vsyncadd [#allocation5], %s377
          %s380 = sshll.u32 [#allocation4], 4
          %s381 = int_to_ptr.vmem [resolvable:$true] %s380
          %383 = dma.vmem_to_hbm [thread:$0]  %s381, 16, %s6, [#allocation5]
        $region48: #{tpu_custom_call.1} parent=35 // pred_fallthru
          _
        // Predicated region
        $region49: #{tpu_custom_call.1} parent=35 // pred_check
          %p384 = pneg %p148
        $region50: #{tpu_custom_call.1} parent=35 // pred_check_branch
          %386 = sbr.rel (%p384) target = $region52
        $region51: #{tpu_custom_call.1} parent=35 // pred_region
          %387 = dma.done [#allocation5], 16
        $region52: #{tpu_custom_call.1} parent=35 // pred_fallthru
          _
      $region36: #{tpu_custom_call.1} parent=5 // pred_fallthru
        _
      %p388 = scmp.le.s32.totalorder 2, %s20
      // Predicated region
      $region53: #{tpu_custom_call.1} parent=5 // pred_check
        %p389 = pneg %p388
      $region54: #{tpu_custom_call.1} parent=5 // pred_check_branch
        %391 = sbr.rel (%p389) target = $region56
      $region55: #{tpu_custom_call.1} parent=5 // pred_region
        %s392 = ssub.s32 %s20, 2
        // Predicated region
        $region57: #{tpu_custom_call.1} parent=55 // pred_check
          %p393 = pneg %p133
        $region58: #{tpu_custom_call.1} parent=55 // pred_check_branch
          %395 = sbr.rel (%p393) target = $region60
        $region59: #{tpu_custom_call.1} parent=55 // pred_region
          %p396 = scmp.lt.s32.totalorder %s26, 27
          %s397 = scalar_select %p396, %s26, 27
          %s398 = scalar_lea.vmem %s5, %s397
        $region60: #{tpu_custom_call.1} parent=55 // pred_fallthru
          _
      $region56: #{tpu_custom_call.1} parent=5 // pred_fallthru
        _
    $region6: #{tpu_custom_call.1} parent=1 // loop_footer
      %s24 = sadd.s32 1, %s20
    $region7: #{tpu_custom_call.1} parent=1 // loop_footer_branch
      %19 = sbr.rel target = $region3
    $region8: #{tpu_custom_call.1} parent=1 // loop_exit
      _
    %399 = vsyncpa [#allocation5], 1
    %s400 = scalar_lea.sflag [#allocation5], 1
    %401 = vsyncpa %s400, 1

</llo_original>
